<compile_context>
chip_gen: v7x
topology: tpu7x:2x2x1
jax: 0.10.0
libtpu: 0.0.40
codegen_flags: <defaults>
</compile_context>

<pallas_src>
import functools
import math

import jax
import jax.numpy as jnp
from jax import lax
from jax.experimental import pallas as pl
from jax.experimental.pallas import tpu as pltpu

LN_EPS = 1e-5
_GELU_C = 0.7978845608028654  # sqrt(2/pi)


def _pick_tile(dim, target, align):
    """Largest multiple of `align` <= target that divides dim; else the full dim."""
    if dim <= target:
        return dim
    t = (target // align) * align
    while t >= align:
        if dim % t == 0:
            return t
        t -= align
    return dim


def _layernorm_f32(x, g, b):
    mu = jnp.mean(x, axis=-1, keepdims=True)
    var = jnp.mean(jnp.square(x - mu), axis=-1, keepdims=True)
    return (x - mu) * lax.rsqrt(var + LN_EPS) * g + b


# ---------------- Fused LayerNorm + Linear (y = LN(x) @ W + b) ----------------
def _ln_linear_kernel(x_ref, g_ref, b_ref, w_ref, bias_ref, o_ref):
    x = x_ref[...].astype(jnp.float32)
    xn = _layernorm_f32(x, g_ref[...].astype(jnp.float32),
                        b_ref[...].astype(jnp.float32))
    acc = jnp.dot(xn.astype(w_ref.dtype), w_ref[...],
                  preferred_element_type=jnp.float32)
    o_ref[...] = (acc + bias_ref[...].astype(jnp.float32)).astype(o_ref.dtype)


def ln_linear(x2d, gamma, beta, w, bias, *, tm_target=256, tn_target=512):
    M, D = x2d.shape
    D2, N = w.shape
    assert D == D2
    tm = _pick_tile(M, tm_target, 8)
    tn = _pick_tile(N, tn_target, 128)
    grid = (M // tm, N // tn)
    return pl.pallas_call(
        _ln_linear_kernel,
        out_shape=jax.ShapeDtypeStruct((M, N), x2d.dtype),
        grid=grid,
        in_specs=[
            pl.BlockSpec((tm, D), lambda i, j: (i, 0)),
            pl.BlockSpec((1, D), lambda i, j: (0, 0)),
            pl.BlockSpec((1, D), lambda i, j: (0, 0)),
            pl.BlockSpec((D, tn), lambda i, j: (0, j)),
            pl.BlockSpec((1, tn), lambda i, j: (0, j)),
        ],
        out_specs=pl.BlockSpec((tm, tn), lambda i, j: (i, j)),
        compiler_params=pltpu.CompilerParams(
            dimension_semantics=("parallel", "parallel")),
    )(x2d, gamma.reshape(1, D), beta.reshape(1, D), w, bias.reshape(1, N))


# ------- Fused causal attention + output projection + residual (per batch) -------
def _attn_proj_residual_kernel(qkv_ref, wp_ref, bp_ref, r_ref, o_ref, *,
                               n_head, scale):
    T = qkv_ref.shape[1]
    D = qkv_ref.shape[2] // 3
    hd = D // n_head

    qkv = qkv_ref[0].astype(jnp.float32)                    # (T, 3D) in VMEM
    row = lax.broadcasted_iota(jnp.int32, (T, T), 0)
    col = lax.broadcasted_iota(jnp.int32, (T, T), 1)
    causal = col <= row
    neg = jnp.float32(-1e30)

    heads = []
    for h in range(n_head):  # static unroll over heads; all slices are static
        qh = qkv[:, h * hd:(h + 1) * hd]                     # (T, hd)
        kh = qkv[:, D + h * hd:D + (h + 1) * hd]             # (T, hd)
        vh = qkv[:, 2 * D + h * hd:2 * D + (h + 1) * hd]     # (T, hd)
        # q @ k^T without an explicit transpose: contract the hd dims.
        s = lax.dot_general(qh, kh, (((1,), (1,)), ((), ())),
                            preferred_element_type=jnp.float32) * scale  # (T, T)
        s = jnp.where(causal, s, neg)
        s = s - jnp.max(s, axis=-1, keepdims=True)
        p = jnp.exp(s)
        p = p * pl.reciprocal(jnp.sum(p, axis=-1, keepdims=True), approx=True)
        heads.append(jnp.dot(p, vh, preferred_element_type=jnp.float32))  # (T, hd)

    o = jnp.concatenate(heads, axis=-1)                      # (T, D), head merge in VMEM
    y = jnp.dot(o.astype(wp_ref.dtype), wp_ref[...],
                preferred_element_type=jnp.float32)           # output projection
    o_ref[0] = (y + bp_ref[...].astype(jnp.float32)
                + r_ref[0].astype(jnp.float32)).astype(o_ref.dtype)


def attention_proj_residual(qkv, wproj, bproj, resid, n_head):
    # qkv: (B, T, 3D) straight from the QKV projection (no wrapper transposes);
    # resid: (B, T, D) residual stream.  One batch element per grid step.
    B, T, D3 = qkv.shape
    D = D3 // 3
    scale = 1.0 / math.sqrt(D // n_head)
    return pl.pallas_call(
        functools.partial(_attn_proj_residual_kernel, n_head=n_head, scale=scale),
        out_shape=jax.ShapeDtypeStruct((B, T, D), resid.dtype),
        grid=(B,),
        in_specs=[
            pl.BlockSpec((1, T, D3), lambda b: (b, 0, 0)),
            pl.BlockSpec((D, D), lambda b: (0, 0)),   # constant block: DMA'd once
            pl.BlockSpec((1, D), lambda b: (0, 0)),
            pl.BlockSpec((1, T, D), lambda b: (b, 0, 0)),
        ],
        out_specs=pl.BlockSpec((1, T, D), lambda b: (b, 0, 0)),
        compiler_params=pltpu.CompilerParams(dimension_semantics=("parallel",)),
    )(qkv, wproj, bproj.reshape(1, D), resid)


# -------- Fused LayerNorm + FFN (GELU tanh) + residual, hidden dim chunked --------
def _ln_ffn_residual_kernel(x_ref, g_ref, b_ref, w1_ref, b1_ref, w2_ref, b2_ref,
                            o_ref, acc_ref):
    h_idx = pl.program_id(1)  # reduction over hidden (4*D) chunks, last grid axis

    @pl.when(h_idx == 0)
    def _():
        acc_ref[...] = jnp.zeros_like(acc_ref)

    x = x_ref[...].astype(jnp.float32)
    xn = _layernorm_f32(x, g_ref[...].astype(jnp.float32),
                        b_ref[...].astype(jnp.float32))
    h = jnp.dot(xn.astype(w1_ref.dtype), w1_ref[...],
                preferred_element_type=jnp.float32) + b1_ref[...].astype(jnp.float32)
    # GELU, tanh approximation (matches torch.nn.GELU(approximate='tanh'))
    h = 0.5 * h * (1.0 + jnp.tanh(_GELU_C * (h + 0.044715 * h * h * h)))
    acc_ref[...] += jnp.dot(h.astype(w2_ref.dtype), w2_ref[...],
                            preferred_element_type=jnp.float32)

    @pl.when(h_idx == pl.num_programs(1) - 1)
    def _():
        o_ref[...] = (acc_ref[...] + b2_ref[...].astype(jnp.float32)
                      + x).astype(o_ref.dtype)


def ln_ffn_residual(x2d, gamma, beta, w1, b1, w2, b2, *,
                    tm_target=256, th_target=512):
    M, D = x2d.shape
    D2, H = w1.shape
    assert D == D2 and w2.shape == (H, D)
    tm = _pick_tile(M, tm_target, 8)
    th = _pick_tile(H, th_target, 128)
    grid = (M // tm, H // th)  # reduction (hidden) axis last
    return pl.pallas_call(
        _ln_ffn_residual_kernel,
        out_shape=jax.ShapeDtypeStruct((M, D), x2d.dtype),
        grid=grid,
        in_specs=[
            pl.BlockSpec((tm, D), lambda i, h: (i, 0)),
            pl.BlockSpec((1, D), lambda i, h: (0, 0)),
            pl.BlockSpec((1, D), lambda i, h: (0, 0)),
            pl.BlockSpec((D, th), lambda i, h: (0, h)),
            pl.BlockSpec((1, th), lambda i, h: (0, h)),
            pl.BlockSpec((th, D), lambda i, h: (h, 0)),
            pl.BlockSpec((1, D), lambda i, h: (0, 0)),
        ],
        out_specs=pl.BlockSpec((tm, D), lambda i, h: (i, 0)),
        scratch_shapes=[pltpu.VMEM((tm, D), jnp.float32)],
        compiler_params=pltpu.CompilerParams(
            dimension_semantics=("parallel", "arbitrary")),
    )(x2d, gamma.reshape(1, D), beta.reshape(1, D),
      w1, b1.reshape(1, H), w2, b2.reshape(1, D))


# -------- Final LayerNorm + tied lm_head (contract D inside kernel, no wte.T) --------
def _ln_lm_head_kernel(x_ref, g_ref, b_ref, w_ref, o_ref):
    x = x_ref[...].astype(jnp.float32)
    xn = _layernorm_f32(x, g_ref[...].astype(jnp.float32),
                        b_ref[...].astype(jnp.float32))
    # wte block is (tv, D); contract the D dims directly -> (tm, tv). No bias.
    logits = lax.dot_general(xn.astype(w_ref.dtype), w_ref[...],
                             (((1,), (1,)), ((), ())),
                             preferred_element_type=jnp.float32)
    o_ref[...] = logits.astype(o_ref.dtype)


def ln_lm_head(x2d, gamma, beta, wte, *, tm_target=256, tv_target=1024):
    M, D = x2d.shape
    V, D2 = wte.shape
    assert D == D2
    tm = _pick_tile(M, tm_target, 8)
    tv = _pick_tile(V, tv_target, 128)
    grid = (M // tm, V // tv)
    return pl.pallas_call(
        _ln_lm_head_kernel,
        out_shape=jax.ShapeDtypeStruct((M, V), jnp.float32),
        grid=grid,
        in_specs=[
            pl.BlockSpec((tm, D), lambda i, j: (i, 0)),
            pl.BlockSpec((1, D), lambda i, j: (0, 0)),
            pl.BlockSpec((1, D), lambda i, j: (0, 0)),
            pl.BlockSpec((tv, D), lambda i, j: (j, 0)),
        ],
        out_specs=pl.BlockSpec((tm, tv), lambda i, j: (i, j)),
        compiler_params=pltpu.CompilerParams(
            dimension_semantics=("parallel", "parallel")),
    )(x2d, gamma.reshape(1, D), beta.reshape(1, D), wte)


# ---------------- Model glue ----------------
def transformer_block(x2, B, T, p, n_head):
    M, D = x2.shape

    # Fused LayerNorm1 + QKV projection -> (M, 3D).
    qkv = ln_linear(x2, p["ln1_g"], p["ln1_b"], p["attn_w"], p["attn_b"])

    # Fused causal attention + output projection + residual (per batch element);
    # the (M, 3D)->(B, T, 3D) / (M, D)->(B, T, D) reshapes are free views.
    x2 = attention_proj_residual(qkv.reshape(B, T, 3 * D),
                                 p["attn_proj_w"], p["attn_proj_b"],
                                 x2.reshape(B, T, D), n_head).reshape(M, D)

    # Fused LayerNorm2 + FFN (GELU tanh) + residual add.
    x2 = ln_ffn_residual(x2, p["ln2_g"], p["ln2_b"],
                         p["fc_w"], p["fc_b"], p["proj_w"], p["proj_b"])
    return x2


def gpt_forward(idx, params, config):
    B, T = idx.shape
    D = config["n_embed"]
    V = config["vocab_size"]
    assert T <= config["block_size"]

    # TODO(synk): embedding gather stays in XLA (data-dependent gather).
    tok = jnp.take(params["wte"], idx, axis=0)            # (B, T, D)
    pos = params["wpe"][:T]                               # (T, D)
    x2 = (tok + pos[None, :, :]).reshape(B * T, D)

    for p in params["blocks"]:
        x2 = transformer_block(x2, B, T, p, config["n_head"])

    # Final LayerNorm + tied lm_head (weight = wte, no bias, no HBM transpose).
    logits = ln_lm_head(x2, params["lnf_g"], params["lnf_b"], params["wte"])
    return logits.reshape(B, T, V)


def init_params(key, config, dtype=jnp.float32):
    D = config["n_embed"]
    V = config["vocab_size"]
    BS = config["block_size"]
    L = config["n_layer"]
    keys = jax.random.split(key, 2 + L)
    std = 0.02
    wte = (std * jax.random.normal(keys[0], (V, D), jnp.float32)).astype(dtype)
    wpe = (std * jax.random.normal(keys[1], (BS, D), jnp.float32)).astype(dtype)
    blocks = []
    for l in range(L):
        lk = jax.random.split(keys[2 + l], 4)
        blocks.append(dict(
            ln1_g=jnp.ones((D,), dtype), ln1_b=jnp.zeros((D,), dtype),
            attn_w=(std * jax.random.normal(lk[0], (D, 3 * D), jnp.float32)).astype(dtype),
            attn_b=jnp.zeros((3 * D,), dtype),
            attn_proj_w=(std * jax.random.normal(lk[1], (D, D), jnp.float32)).astype(dtype),
            attn_proj_b=jnp.zeros((D,), dtype),
            ln2_g=jnp.ones((D,), dtype), ln2_b=jnp.zeros((D,), dtype),
            fc_w=(std * jax.random.normal(lk[2], (D, 4 * D), jnp.float32)).astype(dtype),
            fc_b=jnp.zeros((4 * D,), dtype),
            proj_w=(std * jax.random.normal(lk[3], (4 * D, D), jnp.float32)).astype(dtype),
            proj_b=jnp.zeros((D,), dtype),
        ))
    return dict(wte=wte, wpe=wpe, blocks=blocks,
                lnf_g=jnp.ones((D,), dtype),
                lnf_b=jnp.zeros((D,), dtype))


if __name__ == "__main__":
    config = dict(vocab_size=128, block_size=16, n_layer=2, n_head=4, n_embed=32)
    key = jax.random.PRNGKey(0)
    pkey, ikey = jax.random.split(key)
    params = init_params(pkey, config)

    B, T = 2, 8
    idx = jax.random.randint(ikey, (B, T), 0, config["vocab_size"], dtype=jnp.int32)

    logits = gpt_forward(idx, params, config)
    logits = jax.block_until_ready(logits)
    assert logits.shape == (B, T, config["vocab_size"])
    assert bool(jnp.all(jnp.isfinite(logits)))
    print("KERNEL_OK")
</pallas_src>

<mosaic_0001>
module attributes {stable_mosaic.version = 11 : i64} {
  func.func @_ln_linear_kernel(%arg0: i32, %arg1: i32, %arg2: memref<16x32xf32, #tpu.memory_space<vmem>>, %arg3: memref<1x32xf32, #tpu.memory_space<vmem>>, %arg4: memref<1x32xf32, #tpu.memory_space<vmem>>, %arg5: memref<32x96xf32, #tpu.memory_space<vmem>>, %arg6: memref<1x96xf32, #tpu.memory_space<vmem>>, %arg7: memref<16x96xf32, #tpu.memory_space<vmem>>) attributes {dimension_semantics = [#tpu.dimension_semantics<parallel>, #tpu.dimension_semantics<parallel>], iteration_bounds = array<i64: 1, 1>, scalar_prefetch = 0 : i64, scratch_operands = 0 : i64, tpu.core_type = #tpu.core_type<tc>, window_params = [{transform_indices = @transform_0, window_bounds = array<i64: 16, 32>}, {pipeline_mode = #tpu.pipeline_mode<synchronous>, transform_indices = @transform_1, window_bounds = array<i64: 1, 32>}, {pipeline_mode = #tpu.pipeline_mode<synchronous>, transform_indices = @transform_2, window_bounds = array<i64: 1, 32>}, {transform_indices = @transform_3, window_bounds = array<i64: 32, 96>}, {transform_indices = @transform_4, window_bounds = array<i64: 1, 96>}, {transform_indices = @transform_5, window_bounds = array<i64: 16, 96>}]} {
    %c0 = arith.constant 0 : index
    %c0_0 = arith.constant 0 : index
    %0 = vector.load %arg2[%c0, %c0_0] : memref<16x32xf32, #tpu.memory_space<vmem>>, vector<16x32xf32>
    %c0_1 = arith.constant 0 : index
    %c0_2 = arith.constant 0 : index
    %1 = vector.load %arg3[%c0_1, %c0_2] : memref<1x32xf32, #tpu.memory_space<vmem>>, vector<1x32xf32>
    %c0_3 = arith.constant 0 : index
    %c0_4 = arith.constant 0 : index
    %2 = vector.load %arg4[%c0_3, %c0_4] : memref<1x32xf32, #tpu.memory_space<vmem>>, vector<1x32xf32>
    %cst = arith.constant dense<0.000000e+00> : vector<16xf32>
    %3 = vector.multi_reduction <add>, %0, %cst [1] : vector<16x32xf32> to vector<16xf32>
    %4 = vector.shape_cast %3 : vector<16xf32> to vector<16x1xf32>
    %cst_5 = arith.constant 3.200000e+01 : f32
    %5 = vector.broadcast %cst_5 : f32 to vector<16x1xf32>
    %6 = arith.divf %4, %5 : vector<16x1xf32>
    %7 = vector.broadcast %6 : vector<16x1xf32> to vector<16x32xf32>
    %8 = arith.subf %0, %7 : vector<16x32xf32>
    %9 = arith.mulf %8, %8 : vector<16x32xf32>
    %cst_6 = arith.constant dense<0.000000e+00> : vector<16xf32>
    %10 = vector.multi_reduction <add>, %9, %cst_6 [1] : vector<16x32xf32> to vector<16xf32>
    %11 = vector.shape_cast %10 : vector<16xf32> to vector<16x1xf32>
    %cst_7 = arith.constant 3.200000e+01 : f32
    %12 = vector.broadcast %cst_7 : f32 to vector<16x1xf32>
    %13 = arith.divf %11, %12 : vector<16x1xf32>
    %14 = vector.broadcast %6 : vector<16x1xf32> to vector<16x32xf32>
    %15 = arith.subf %0, %14 : vector<16x32xf32>
    %cst_8 = arith.constant 9.99999974E-6 : f32
    %16 = vector.broadcast %cst_8 : f32 to vector<16x1xf32>
    %17 = arith.addf %13, %16 : vector<16x1xf32>
    %18 = math.rsqrt %17 : vector<16x1xf32>
    %19 = vector.broadcast %18 : vector<16x1xf32> to vector<16x32xf32>
    %20 = arith.mulf %15, %19 : vector<16x32xf32>
    %21 = vector.broadcast %1 : vector<1x32xf32> to vector<16x32xf32>
    %22 = arith.mulf %20, %21 : vector<16x32xf32>
    %23 = vector.broadcast %2 : vector<1x32xf32> to vector<16x32xf32>
    %24 = arith.addf %22, %23 : vector<16x32xf32>
    %c0_9 = arith.constant 0 : index
    %c0_10 = arith.constant 0 : index
    %25 = vector.load %arg5[%c0_9, %c0_10] : memref<32x96xf32, #tpu.memory_space<vmem>>, vector<32x96xf32>
    %cst_11 = arith.constant dense<0.000000e+00> : vector<16x96xf32>
    %26 = tpu.matmul %24, %25, %cst_11 {dimension_numbers = #tpu.dot_dimension_numbers<[1], [0], [0], [1], [0, 0, 1, 1], [], []>} : vector<16x32xf32>, vector<32x96xf32>, vector<16x96xf32> -> vector<16x96xf32>
    %c0_12 = arith.constant 0 : index
    %c0_13 = arith.constant 0 : index
    %27 = vector.load %arg6[%c0_12, %c0_13] : memref<1x96xf32, #tpu.memory_space<vmem>>, vector<1x96xf32>
    %28 = vector.broadcast %27 : vector<1x96xf32> to vector<16x96xf32>
    %29 = arith.addf %26, %28 : vector<16x96xf32>
    %c0_14 = arith.constant 0 : index
    %c0_15 = arith.constant 0 : index
    %30 = vector.load %arg7[%c0_14, %c0_15] : memref<16x96xf32, #tpu.memory_space<vmem>>, vector<16x96xf32>
    tpu.vector_store %arg7[%c0_14, %c0_15], %29 {strides = array<i32>} : memref<16x96xf32, #tpu.memory_space<vmem>>, vector<16x96xf32>,
    return
  }
  func.func @transform_0(%arg0: i32, %arg1: i32) -> (i32, i32) {
    %c0_i32 = arith.constant 0 : i32
    %c0_i32_0 = arith.constant 0 : i32
    return %arg0, %c0_i32 : i32, i32
  }
  func.func @transform_1(%arg0: i32, %arg1: i32) -> (i32, i32) {
    %c0_i32 = arith.constant 0 : i32
    %c0_i32_0 = arith.constant 0 : i32
    %c0_i32_1 = arith.constant 0 : i32
    return %c0_i32, %c0_i32_0 : i32, i32
  }
  func.func @transform_2(%arg0: i32, %arg1: i32) -> (i32, i32) {
    %c0_i32 = arith.constant 0 : i32
    %c0_i32_0 = arith.constant 0 : i32
    %c0_i32_1 = arith.constant 0 : i32
    return %c0_i32, %c0_i32_0 : i32, i32
  }
  func.func @transform_3(%arg0: i32, %arg1: i32) -> (i32, i32) {
    %c0_i32 = arith.constant 0 : i32
    %c0_i32_0 = arith.constant 0 : i32
    return %c0_i32, %arg1 : i32, i32
  }
  func.func @transform_4(%arg0: i32, %arg1: i32) -> (i32, i32) {
    %c0_i32 = arith.constant 0 : i32
    %c0_i32_0 = arith.constant 0 : i32
    return %c0_i32, %arg1 : i32, i32
  }
  func.func @transform_5(%arg0: i32, %arg1: i32) -> (i32, i32) {
    %c0_i32 = arith.constant 0 : i32
    return %arg0, %arg1 : i32, i32
  }
}

</mosaic_0001>

<llo_original>
// kernel: tpu_custom_call.1
$region0: #{tpu_custom_call.1}
  #allocation0 [shape = 'u32[]', space=smem, size = 0x4, offset = 0x4, fixed_abs, tag = 'smem constant byte address 0x4 - core index']
  #allocation1 [shape = 'u32[144,128]{1,0:T(1,128)}', space=vmem, size = 0x12000, scoped, tag = 'internal scratch']
  %s0 = inlined_call_operand.hbm [shape: f32[16,32], index: 0, kind: input, shape index: {}]
  %s1 = inlined_call_operand.vmem [shape: f32[1,32], index: 1, kind: input, shape index: {}]
  %s2 = inlined_call_operand.vmem [shape: f32[1,32], index: 2, kind: input, shape index: {}]
  %s3 = inlined_call_operand.hbm [shape: f32[32,96], index: 3, kind: input, shape index: {}]
  %s4 = inlined_call_operand.vmem [shape: f32[1,96], index: 4, kind: input, shape index: {}]
  %s5 = inlined_call_operand.hbm [shape: f32[16,96], index: 5, kind: output, shape index: {}]
  %s6 = sld [smem:[#allocation0]]
  $region38: #{tpu_custom_call.1} parent=0
    _
  %s8 = ssub.s32 1, %s6
  %s9 = scalar_select 0, %s8, %s6
  $region1: #{tpu_custom_call.1} parent=0
    #allocation2 [shape = 'u8[8192]{0}', space=vmem, size = 0x2000, scoped, tag = 'input window, operand 0, single buffered']
    #allocation3 [shape = 's32[1]{0}', space=sflag, size = 0x4, scoped, tag = 'scoped memory for tpu_custom_call.1']
    #allocation4 [shape = 's32[1]{0}', space=sflag, size = 0x4, scoped, tag = 'scoped memory for tpu_custom_call.1']
    #allocation5 [shape = 'u8[16384]{0}', space=vmem, size = 0x4000, scoped, tag = 'input window, operand 3, single buffered']
    #allocation6 [shape = 's32[1]{0}', space=sflag, size = 0x4, scoped, tag = 'scoped memory for tpu_custom_call.1']
    #allocation7 [shape = 'u8[8192]{0}', space=vmem, size = 0x2000, scoped, tag = 'output window, operand 0, single buffered']
    %10 = vsyncpa [#allocation3], 0
    %11 = vsyncpa [#allocation6], 0
    %12 = vsyncpa [#allocation4], 0
    // Predicated region
    $region2: #{tpu_custom_call.1} parent=1 // pred_check
      _
    $region3: #{tpu_custom_call.1} parent=1 // pred_check_branch
      %14 = sbr.rel (0) target = $region5
    $region4: #{tpu_custom_call.1} parent=1 // pred_region
      %s16 = ssub.s32 256, 256
      %17 = vsyncadd [#allocation3], %s16
      %s18 = sshll.u32 [#allocation2], 4
      %s19 = int_to_ptr.vmem [resolvable:$true] %s18
      %24 = dma.hbm_to_vmem [thread:$0]  %s0, 256, %s19, [#allocation3], 128, 128, 8
    $region5: #{tpu_custom_call.1} parent=1 // pred_fallthru
      _
    // Predicated region
    $region6: #{tpu_custom_call.1} parent=1 // pred_check
      _
    $region7: #{tpu_custom_call.1} parent=1 // pred_check_branch
      %26 = sbr.rel (0) target = $region9
    $region8: #{tpu_custom_call.1} parent=1 // pred_region
      _
    $region9: #{tpu_custom_call.1} parent=1 // pred_fallthru
      _
    // Predicated region
    $region10: #{tpu_custom_call.1} parent=1 // pred_check
      _
    $region11: #{tpu_custom_call.1} parent=1 // pred_check_branch
      %28 = sbr.rel (0) target = $region13
    $region12: #{tpu_custom_call.1} parent=1 // pred_region
      _
    $region13: #{tpu_custom_call.1} parent=1 // pred_fallthru
      _
    // Predicated region
    $region14: #{tpu_custom_call.1} parent=1 // pred_check
      _
    $region15: #{tpu_custom_call.1} parent=1 // pred_check_branch
      %30 = sbr.rel (0) target = $region17
    $region16: #{tpu_custom_call.1} parent=1 // pred_region
      %s32 = ssub.s32 512, 512
      %33 = vsyncadd [#allocation6], %s32
      %s34 = sshll.u32 [#allocation5], 4
      %s35 = int_to_ptr.vmem [resolvable:$true] %s34
      %40 = dma.hbm_to_vmem [thread:$0]  %s3, 512, %s35, [#allocation6], 128, 128, 8
    $region17: #{tpu_custom_call.1} parent=1 // pred_fallthru
      _
    // Predicated region
    $region18: #{tpu_custom_call.1} parent=1 // pred_check
      _
    $region19: #{tpu_custom_call.1} parent=1 // pred_check_branch
      %42 = sbr.rel (0) target = $region21
    $region20: #{tpu_custom_call.1} parent=1 // pred_region
      _
    $region21: #{tpu_custom_call.1} parent=1 // pred_fallthru
      _
    // Predicated region
    $region22: #{tpu_custom_call.1} parent=1 // pred_check
      _
    $region23: #{tpu_custom_call.1} parent=1 // pred_check_branch
      %44 = sbr.rel (0) target = $region25
    $region24: #{tpu_custom_call.1} parent=1 // pred_region
      %45 = dma.done [#allocation3], 256
    $region25: #{tpu_custom_call.1} parent=1 // pred_fallthru
      _
    // Predicated region
    $region26: #{tpu_custom_call.1} parent=1 // pred_check
      _
    $region27: #{tpu_custom_call.1} parent=1 // pred_check_branch
      %47 = sbr.rel (0) target = $region29
    $region28: #{tpu_custom_call.1} parent=1 // pred_region
      %48 = dma.done [#allocation6], 512
    $region29: #{tpu_custom_call.1} parent=1 // pred_fallthru
      _
    %v49 = vld [vmem:[#allocation2] sm:$0xff]
    %v50 = vld [vmem:[#allocation2 + $0x8] sm:$0xff]
    %v51 = vld [vmem:[%s1] sm:$0x1]
    %v52 = vld [vmem:[%s2] sm:$0x1]
    %vm53 = vcmask 261120
    %v54 = vsel %vm53, %v49, 0.0
    %55 = vadd.xlane.f32.xlu0 %v54
    %v56 = vpop.xlane.xlu0 %55
    %v57 = vsel %vm53, %v50, 0.0
    %58 = vadd.xlane.f32.xlu0 %v57
    %v59 = vpop.xlane.xlu0 %58
    %v60 = vrcp.pop 32.0
    %v61 = vmul.f32 %v56, %v60
    %v62 = vmul.f32 %v59, %v60
    %v63 = vsub.f32 %v49, %v61
    %v64 = vsub.f32 %v50, %v62
    %v65 = vmul.f32 %v63, %v63
    %v66 = vmul.f32 %v64, %v64
    %v67 = vsel %vm53, %v65, 0.0
    %68 = vadd.xlane.f32.xlu0 %v67
    %v69 = vpop.xlane.xlu0 %68
    %v70 = vsel %vm53, %v66, 0.0
    %71 = vadd.xlane.f32.xlu0 %v70
    %v72 = vpop.xlane.xlu0 %71
    %v73 = vmul.f32 %v69, %v60
    %v74 = vmul.f32 %v72, %v60
    %v75 = vadd.f32 %v73, 1e-05
    %v76 = vadd.f32 %v74, 1e-05
    %v77 = vrsqrt.pop %v75
    %v78 = vrsqrt.pop %v76
    %v79 = vmul.f32 %v63, %v77
    %v80 = vmul.f32 %v64, %v78
    %v82 = vlaneseq
    %v83 = vshrl.u32 %v82, 7
    %v84 = vsub.s32 0, %v83
    %v85 = vrot.slane %v51, %v84
    %v87 = vmul.f32 %v79, %v85
    %v88 = vmul.f32 %v80, %v85
    %v90 = vlaneseq
    %v91 = vshrl.u32 %v90, 7
    %v92 = vsub.s32 0, %v91
    %v93 = vrot.slane %v52, %v92
    %v95 = vadd.f32 %v87, %v93
    %v96 = vadd.f32 %v88, %v93
    %v97 = vld [vmem:[#allocation5] sm:$0xff]
    %v98 = vld [vmem:[#allocation5 + $0x8] sm:$0xff]
    %v99 = vld [vmem:[#allocation5 + $0x10] sm:$0xff]
    %v100 = vld [vmem:[#allocation5 + $0x18] sm:$0xff]
    %v101 = vld [vmem:[%s4] sm:$0x1]
    %v103 = vlaneseq
    %v104 = vshrl.u32 %v103, 7
    %v105 = vsub.s32 0, %v104
    %v106 = vrot.slane %v101, %v105
    %v109 = vsel %vm53, %v95, 0
    %v112 = vsel %vm53, %v96, 0
    %114 = vmatprep.subr.mxu0 0.0
    %115 = vmatpush1.msra.mxu0 %v97
    %116 = vmatprep.subr.mxu0 0.0
    %117 = vmatpush1.msra.mxu0 %v98
    %118 = vmatprep.subr.mxu0 0.0
    %119 = vmatpush1.msra.mxu0 %v99
    %120 = vmatprep.subr.mxu0 0.0
    %121 = vmatpush1.msra.mxu0 %v100
    %122 = vmatprep.subr.mxu0 0.0
    %123 = vmatpush1.msra.mxu0 0.0
    %124 = vmatprep.subr.mxu0 0.0
    %125 = vmatpush1.msra.mxu0 0.0
    %126 = vmatprep.subr.mxu0 0.0
    %127 = vmatpush1.msra.mxu0 0.0
    %128 = vmatprep.subr.mxu0 0.0
    %129 = vmatpush1.msra.mxu0 0.0
    %130 = vmatprep.subr.mxu0 0.0
    %131 = vmatpush1.msra.mxu0 0.0
    %132 = vmatprep.subr.mxu0 0.0
    %133 = vmatpush1.msra.mxu0 0.0
    %134 = vmatprep.subr.mxu0 0.0
    %135 = vmatpush1.msra.mxu0 0.0
    %136 = vmatprep.subr.mxu0 0.0
    %137 = vmatpush1.msra.mxu0 0.0
    %138 = vmatprep.subr.mxu0 0.0
    %139 = vmatpush1.msra.mxu0 0.0
    %140 = vmatprep.subr.mxu0 0.0
    %141 = vmatpush1.msra.mxu0 0.0
    %142 = vmatprep.subr.mxu0 0.0
    %143 = vmatpush1.msra.mxu0 0.0
    %144 = vmatprep.subr.mxu0 0.0
    %145 = vmatpush1.msra.mxu0 0.0
    %146 = vmatprep.subr.mxu0 0.0
    %147 = vmatpush1.msra.mxu0 0.0
    %148 = vmatprep.subr.mxu0 0.0
    %149 = vmatpush1.msra.mxu0 0.0
    %150 = vmatprep.subr.mxu0 0.0
    %151 = vmatpush1.msra.mxu0 0.0
    %152 = vmatprep.subr.mxu0 0.0
    %153 = vmatpush1.msra.mxu0 0.0
    %154 = vmatprep.subr.mxu0 0.0
    %155 = vmatpush1.msra.mxu0 0.0
    %156 = vmatprep.subr.mxu0 0.0
    %157 = vmatpush1.msra.mxu0 0.0
    %158 = vmatprep.subr.mxu0 0.0
    %159 = vmatpush1.msra.mxu0 0.0
    %160 = vmatprep.subr.mxu0 0.0
    %161 = vmatpush1.msra.mxu0 0.0
    %162 = vmatprep.subr.mxu0 0.0
    %163 = vmatpush1.msra.mxu0 0.0
    %164 = vmatprep.subr.mxu0 0.0
    %165 = vmatpush1.msra.mxu0 0.0
    %166 = vmatprep.subr.mxu0 0.0
    %167 = vmatpush1.msra.mxu0 0.0
    %168 = vmatprep.subr.mxu0 0.0
    %169 = vmatpush1.msra.mxu0 0.0
    %170 = vmatprep.subr.mxu0 0.0
    %171 = vmatpush1.msra.mxu0 0.0
    %172 = vmatprep.subr.mxu0 0.0
    %173 = vmatpush1.msra.mxu0 0.0
    %174 = vmatprep.subr.mxu0 0.0
    %175 = vmatpush1.msra.mxu0 0.0
    %176 = vmatprep.subr.mxu0 0.0
    %177 = vmatpush1.msra.mxu0 0.0
    %178 = vmatprep.mubr.f32.mxu0 0.0
    %179 = vmatmul.mubr.f32.gmra.mrb[0].mxu0 %v109
    %v180 = vpop.f32.mrb[0].mxu0
    %v181 = vadd.f32 %v106, %v180
    %v182 = vpop.f32.mrb[0].mxu0
    %183 = vmatprep.mubr.f32.mxu0 0.0
    %184 = vmatmul.mubr.f32.gmra.mrb[0].mxu0 %v112
    %v185 = vpop.f32.mrb[0].mxu0
    %v186 = vadd.f32 %v106, %v185
    %v187 = vpop.f32.mrb[0].mxu0
    %188 = vdwg.mxu0
    %vm189 = vcmask 785408
    %190 = vst.msk [vmem:[#allocation7] sm:$0xff] %vm189, %v181
    %191 = vst.msk [vmem:[#allocation7 + $0x8] sm:$0xff] %vm189, %v186
    // Predicated region
    $region30: #{tpu_custom_call.1} parent=1 // pred_check
      _
    $region31: #{tpu_custom_call.1} parent=1 // pred_check_branch
      %193 = sbr.rel (0) target = $region33
    $region32: #{tpu_custom_call.1} parent=1 // pred_region
      %s195 = ssub.s32 256, 256
      %196 = vsyncadd [#allocation4], %s195
      %s197 = sshll.u32 [#allocation7], 4
      %s198 = int_to_ptr.vmem [resolvable:$true] %s197
      %203 = dma.vmem_to_hbm [thread:$0]  %s198, 256, %s5, [#allocation4], 128, 128, 8
    $region33: #{tpu_custom_call.1} parent=1 // pred_fallthru
      _
    // Predicated region
    $region34: #{tpu_custom_call.1} parent=1 // pred_check
      _
    $region35: #{tpu_custom_call.1} parent=1 // pred_check_branch
      %205 = sbr.rel (0) target = $region37
    $region36: #{tpu_custom_call.1} parent=1 // pred_region
      %206 = dma.done [#allocation4], 256
    $region37: #{tpu_custom_call.1} parent=1 // pred_fallthru
      _
    %207 = vsyncpa [#allocation3], 1
    %208 = vsyncpa [#allocation6], 1
    %209 = vsyncpa [#allocation4], 1

</llo_original>
